<compile_context>
chip_gen: v7x
topology: tpu7x:2x2x1
jax: 0.10.0
libtpu: 0.0.40
codegen_flags: <defaults>
</compile_context>

<pallas_src>
import functools

import jax
import jax.numpy as jnp
from jax import lax
from jax.experimental import pallas as pl
from jax.experimental.pallas import tpu as pltpu


_SQRT_HALF = 0.7071067811865476


def _gelu(x, approximate):
    if approximate:
        # tanh form -> EUP (separate VLIW slot, overlaps MXU / loads).
        return jax.nn.gelu(x, approximate=True)
    # Exact (erf) GELU, matching torch.nn.GELU() default.  VALU-heavy.
    return 0.5 * x * (1.0 + lax.erf(x * _SQRT_HALF))


def _round_up(n, m):
    return ((n + m - 1) // m) * m


def reinforce_kernel(x_ref, w1_ref, b1_ref, w2_ref, b2_ref, w3_ref, b3_ref,
                     out_ref, *, approximate_gelu):
    x = x_ref[...]                                              # (TB, obs_dim)

    # Layer 1: Linear + GELU
    h1 = jnp.dot(x, w1_ref[...], preferred_element_type=jnp.float32)
    h1 = _gelu(h1 + b1_ref[...], approximate_gelu)              # (TB, 128)

    # Layer 2: Linear + GELU
    h2 = jnp.dot(h1, w2_ref[...], preferred_element_type=jnp.float32)
    h2 = _gelu(h2 + b2_ref[...], approximate_gelu)              # (TB, 128)

    # Layer 3: Linear (compact n_actions-wide output)
    logits = jnp.dot(h2, w3_ref[...], preferred_element_type=jnp.float32)
    logits = logits + b3_ref[...]                               # (TB, A)

    # Numerically stable softmax; exact divide so each row sums to 1.
    m = jnp.max(logits, axis=-1, keepdims=True)
    e = jnp.exp(logits - m)
    out_ref[...] = e / jnp.sum(e, axis=-1, keepdims=True)


def reinforce_forward(x, params, *, block_batch=1024, approximate_gelu=True):
    """Softmax policy probabilities, shape (batch, n_actions)."""
    w1, b1, w2, b2, w3, b3 = params
    batch, obs_dim = x.shape
    hidden = w1.shape[1]
    n_actions = w3.shape[1]

    # Batch tile: as big as block_batch allows, but keep >=2 grid steps when
    # possible so v7x's 2 TensorCores both get work ("parallel" batch axis).
    tb = max(8, min(block_batch, _round_up(pl.cdiv(batch, 2), 8)))
    b_pad = _round_up(batch, tb)
    grid = (b_pad // tb,)

    if b_pad != batch:
        x_p = jnp.zeros((b_pad, obs_dim), jnp.float32).at[:batch].set(x)
    else:
        x_p = x

    cost = pl.CostEstimate(
        flops=2 * b_pad * (obs_dim * hidden + hidden * hidden
                           + hidden * n_actions),
        transcendentals=b_pad * (2 * hidden + n_actions),
        bytes_accessed=4 * (b_pad * obs_dim + b_pad * n_actions
                            + obs_dim * hidden + hidden * hidden
                            + hidden * n_actions + 2 * hidden + n_actions),
    )

    kernel = functools.partial(reinforce_kernel,
                               approximate_gelu=approximate_gelu)

    out_p = pl.pallas_call(
        kernel,
        out_shape=jax.ShapeDtypeStruct((b_pad, n_actions), jnp.float32),
        grid=grid,
        in_specs=[
            pl.BlockSpec((tb, obs_dim), lambda i: (i, 0)),        # x: streamed
            pl.BlockSpec((obs_dim, hidden), lambda i: (0, 0)),    # w1: resident
            pl.BlockSpec((1, hidden), lambda i: (0, 0)),          # b1: resident
            pl.BlockSpec((hidden, hidden), lambda i: (0, 0)),     # w2: resident
            pl.BlockSpec((1, hidden), lambda i: (0, 0)),          # b2: resident
            pl.BlockSpec((hidden, n_actions), lambda i: (0, 0)),  # w3: resident
            pl.BlockSpec((1, n_actions), lambda i: (0, 0)),       # b3: resident
        ],
        out_specs=pl.BlockSpec((tb, n_actions), lambda i: (i, 0)),
        compiler_params=pltpu.CompilerParams(
            dimension_semantics=("parallel",),   # shard batch across v7x TCs
        ),
        cost_estimate=cost,
    )(x_p, w1, b1, w2, b2, w3, b3)

    return out_p[:batch] if b_pad != batch else out_p


def init_params(key, obs_dim, hidden, n_actions):
    # PyTorch Linear default init: U(-1/sqrt(fan_in), +1/sqrt(fan_in)).
    def linear_init(k, fan_in, fan_out):
        kw, kb = jax.random.split(k)
        bound = 1.0 / jnp.sqrt(fan_in)
        w = jax.random.uniform(kw, (fan_in, fan_out), jnp.float32, -bound, bound)
        b = jax.random.uniform(kb, (fan_out,), jnp.float32, -bound, bound)
        return w, b.reshape(1, fan_out)

    k1, k2, k3 = jax.random.split(key, 3)
    w1, b1 = linear_init(k1, obs_dim, hidden)
    w2, b2 = linear_init(k2, hidden, hidden)
    w3, b3 = linear_init(k3, hidden, n_actions)
    return w1, b1, w2, b2, w3, b3


def _reference(x, params, *, approximate):
    w1, b1, w2, b2, w3, b3 = params
    h1 = jax.nn.gelu(x @ w1 + b1, approximate=approximate)
    h2 = jax.nn.gelu(h1 @ w2 + b2, approximate=approximate)
    return jax.nn.softmax(h2 @ w3 + b3, axis=-1)


if __name__ == "__main__":
    obs_dim, hidden, n_actions = 4, 128, 6

    key = jax.random.PRNGKey(0)
    kx, kx2, kp = jax.random.split(key, 3)
    params = init_params(kp, obs_dim, hidden, n_actions)

    # Small batch (single grid step), fast tanh-GELU path (default).
    batch = 8
    x = jax.random.normal(kx, (batch, obs_dim), dtype=jnp.float32)
    probs = jax.block_until_ready(reinforce_forward(x, params))
    ref = _reference(x, params, approximate=True)
    assert probs.shape == (batch, n_actions)
    assert jnp.allclose(probs, ref, atol=2e-3, rtol=2e-3)
    assert jnp.allclose(jnp.sum(probs, axis=-1), 1.0, atol=1e-3)

    # Exact-erf parity path (matches torch.nn.GELU() default).
    probs_exact = jax.block_until_ready(
        reinforce_forward(x, params, approximate_gelu=False))
    ref_exact = _reference(x, params, approximate=False)
    assert jnp.allclose(probs_exact, ref_exact, atol=2e-3, rtol=2e-3)
    assert jnp.allclose(jnp.sum(probs_exact, axis=-1), 1.0, atol=1e-3)

    # Larger, non-tile-multiple batch (exercises grid pipelining + row padding).
    batch2 = 300
    x2 = jax.random.normal(kx2, (batch2, obs_dim), dtype=jnp.float32)
    probs2 = jax.block_until_ready(reinforce_forward(x2, params))
    ref2 = _reference(x2, params, approximate=True)
    assert probs2.shape == (batch2, n_actions)
    assert jnp.allclose(probs2, ref2, atol=2e-3, rtol=2e-3)
    assert jnp.allclose(jnp.sum(probs2, axis=-1), 1.0, atol=1e-3)

    print("KERNEL_OK")
</pallas_src>

<mosaic_0001>
module attributes {stable_mosaic.version = 11 : i64} {
  func.func @reinforce_kernel(%arg0: i32, %arg1: memref<8x4xf32, #tpu.memory_space<vmem>>, %arg2: memref<4x128xf32, #tpu.memory_space<vmem>>, %arg3: memref<1x128xf32, #tpu.memory_space<vmem>>, %arg4: memref<128x128xf32, #tpu.memory_space<vmem>>, %arg5: memref<1x128xf32, #tpu.memory_space<vmem>>, %arg6: memref<128x6xf32, #tpu.memory_space<vmem>>, %arg7: memref<1x6xf32, #tpu.memory_space<vmem>>, %arg8: memref<8x6xf32, #tpu.memory_space<vmem>>) attributes {dimension_semantics = [#tpu.dimension_semantics<parallel>], iteration_bounds = array<i64: 1>, scalar_prefetch = 0 : i64, scratch_operands = 0 : i64, tpu.core_type = #tpu.core_type<tc>, window_params = [{transform_indices = @transform_0, window_bounds = array<i64: 8, 4>}, {pipeline_mode = #tpu.pipeline_mode<synchronous>, transform_indices = @transform_1, window_bounds = array<i64: 4, 128>}, {pipeline_mode = #tpu.pipeline_mode<synchronous>, transform_indices = @transform_2, window_bounds = array<i64: 1, 128>}, {pipeline_mode = #tpu.pipeline_mode<synchronous>, transform_indices = @transform_3, window_bounds = array<i64: 128, 128>}, {pipeline_mode = #tpu.pipeline_mode<synchronous>, transform_indices = @transform_4, window_bounds = array<i64: 1, 128>}, {pipeline_mode = #tpu.pipeline_mode<synchronous>, transform_indices = @transform_5, window_bounds = array<i64: 128, 6>}, {pipeline_mode = #tpu.pipeline_mode<synchronous>, transform_indices = @transform_6, window_bounds = array<i64: 1, 6>}, {transform_indices = @transform_7, window_bounds = array<i64: 8, 6>}]} {
    %c0 = arith.constant 0 : index
    %c0_0 = arith.constant 0 : index
    %0 = vector.load %arg1[%c0, %c0_0] : memref<8x4xf32, #tpu.memory_space<vmem>>, vector<8x4xf32>
    %c0_1 = arith.constant 0 : index
    %c0_2 = arith.constant 0 : index
    %1 = vector.load %arg2[%c0_1, %c0_2] : memref<4x128xf32, #tpu.memory_space<vmem>>, vector<4x128xf32>
    %cst = arith.constant dense<0.000000e+00> : vector<8x128xf32>
    %2 = tpu.matmul %0, %1, %cst {dimension_numbers = #tpu.dot_dimension_numbers<[1], [0], [0], [1], [0, 0, 1, 1], [], []>} : vector<8x4xf32>, vector<4x128xf32>, vector<8x128xf32> -> vector<8x128xf32>
    %c0_3 = arith.constant 0 : index
    %c0_4 = arith.constant 0 : index
    %3 = vector.load %arg3[%c0_3, %c0_4] : memref<1x128xf32, #tpu.memory_space<vmem>>, vector<1x128xf32>
    %4 = vector.broadcast %3 : vector<1x128xf32> to vector<8x128xf32>
    %5 = arith.addf %2, %4 : vector<8x128xf32>
    %6 = arith.mulf %5, %5 : vector<8x128xf32>
    %7 = arith.mulf %5, %6 : vector<8x128xf32>
    %cst_5 = arith.constant 4.471500e-02 : f32
    %8 = vector.broadcast %cst_5 : f32 to vector<8x128xf32>
    %9 = arith.mulf %8, %7 : vector<8x128xf32>
    %10 = arith.addf %5, %9 : vector<8x128xf32>
    %cst_6 = arith.constant 0.797884583 : f32
    %11 = vector.broadcast %cst_6 : f32 to vector<8x128xf32>
    %12 = arith.mulf %11, %10 : vector<8x128xf32>
    %13 = math.tanh %12 : vector<8x128xf32>
    %cst_7 = arith.constant 1.000000e+00 : f32
    %14 = vector.broadcast %cst_7 : f32 to vector<8x128xf32>
    %15 = arith.addf %14, %13 : vector<8x128xf32>
    %cst_8 = arith.constant 5.000000e-01 : f32
    %16 = vector.broadcast %cst_8 : f32 to vector<8x128xf32>
    %17 = arith.mulf %16, %15 : vector<8x128xf32>
    %18 = arith.mulf %5, %17 : vector<8x128xf32>
    %c0_9 = arith.constant 0 : index
    %c0_10 = arith.constant 0 : index
    %19 = vector.load %arg4[%c0_9, %c0_10] : memref<128x128xf32, #tpu.memory_space<vmem>>, vector<128x128xf32>
    %cst_11 = arith.constant dense<0.000000e+00> : vector<8x128xf32>
    %20 = tpu.matmul %18, %19, %cst_11 {dimension_numbers = #tpu.dot_dimension_numbers<[1], [0], [0], [1], [0, 0, 1, 1], [], []>} : vector<8x128xf32>, vector<128x128xf32>, vector<8x128xf32> -> vector<8x128xf32>
    %c0_12 = arith.constant 0 : index
    %c0_13 = arith.constant 0 : index
    %21 = vector.load %arg5[%c0_12, %c0_13] : memref<1x128xf32, #tpu.memory_space<vmem>>, vector<1x128xf32>
    %22 = vector.broadcast %21 : vector<1x128xf32> to vector<8x128xf32>
    %23 = arith.addf %20, %22 : vector<8x128xf32>
    %24 = arith.mulf %23, %23 : vector<8x128xf32>
    %25 = arith.mulf %23, %24 : vector<8x128xf32>
    %cst_14 = arith.constant 4.471500e-02 : f32
    %26 = vector.broadcast %cst_14 : f32 to vector<8x128xf32>
    %27 = arith.mulf %26, %25 : vector<8x128xf32>
    %28 = arith.addf %23, %27 : vector<8x128xf32>
    %cst_15 = arith.constant 0.797884583 : f32
    %29 = vector.broadcast %cst_15 : f32 to vector<8x128xf32>
    %30 = arith.mulf %29, %28 : vector<8x128xf32>
    %31 = math.tanh %30 : vector<8x128xf32>
    %cst_16 = arith.constant 1.000000e+00 : f32
    %32 = vector.broadcast %cst_16 : f32 to vector<8x128xf32>
    %33 = arith.addf %32, %31 : vector<8x128xf32>
    %cst_17 = arith.constant 5.000000e-01 : f32
    %34 = vector.broadcast %cst_17 : f32 to vector<8x128xf32>
    %35 = arith.mulf %34, %33 : vector<8x128xf32>
    %36 = arith.mulf %23, %35 : vector<8x128xf32>
    %c0_18 = arith.constant 0 : index
    %c0_19 = arith.constant 0 : index
    %37 = vector.load %arg6[%c0_18, %c0_19] : memref<128x6xf32, #tpu.memory_space<vmem>>, vector<128x6xf32>
    %cst_20 = arith.constant dense<0.000000e+00> : vector<8x6xf32>
    %38 = tpu.matmul %36, %37, %cst_20 {dimension_numbers = #tpu.dot_dimension_numbers<[1], [0], [0], [1], [0, 0, 1, 1], [], []>} : vector<8x128xf32>, vector<128x6xf32>, vector<8x6xf32> -> vector<8x6xf32>
    %c0_21 = arith.constant 0 : index
    %c0_22 = arith.constant 0 : index
    %39 = vector.load %arg7[%c0_21, %c0_22] : memref<1x6xf32, #tpu.memory_space<vmem>>, vector<1x6xf32>
    %40 = vector.broadcast %39 : vector<1x6xf32> to vector<8x6xf32>
    %41 = arith.addf %38, %40 : vector<8x6xf32>
    %cst_23 = arith.constant dense<0xFF800000> : vector<8xf32>
    %42 = vector.multi_reduction <maximumf>, %41, %cst_23 [1] : vector<8x6xf32> to vector<8xf32>
    %43 = vector.shape_cast %42 : vector<8xf32> to vector<8x1xf32>
    %44 = vector.broadcast %43 : vector<8x1xf32> to vector<8x6xf32>
    %45 = arith.subf %41, %44 : vector<8x6xf32>
    %46 = math.exp %45 : vector<8x6xf32>
    %cst_24 = arith.constant dense<0.000000e+00> : vector<8xf32>
    %47 = vector.multi_reduction <add>, %46, %cst_24 [1] : vector<8x6xf32> to vector<8xf32>
    %48 = vector.shape_cast %47 : vector<8xf32> to vector<8x1xf32>
    %49 = vector.broadcast %48 : vector<8x1xf32> to vector<8x6xf32>
    %50 = arith.divf %46, %49 : vector<8x6xf32>
    %c0_25 = arith.constant 0 : index
    %c0_26 = arith.constant 0 : index
    %51 = vector.load %arg8[%c0_25, %c0_26] : memref<8x6xf32, #tpu.memory_space<vmem>>, vector<8x6xf32>
    tpu.vector_store %arg8[%c0_25, %c0_26], %50 {strides = array<i32>} : memref<8x6xf32, #tpu.memory_space<vmem>>, vector<8x6xf32>,
    return
  }
  func.func @transform_0(%arg0: i32) -> (i32, i32) {
    %c0_i32 = arith.constant 0 : i32
    %c0_i32_0 = arith.constant 0 : i32
    return %arg0, %c0_i32 : i32, i32
  }
  func.func @transform_1(%arg0: i32) -> (i32, i32) {
    %c0_i32 = arith.constant 0 : i32
    %c0_i32_0 = arith.constant 0 : i32
    %c0_i32_1 = arith.constant 0 : i32
    return %c0_i32, %c0_i32_0 : i32, i32
  }
  func.func @transform_2(%arg0: i32) -> (i32, i32) {
    %c0_i32 = arith.constant 0 : i32
    %c0_i32_0 = arith.constant 0 : i32
    %c0_i32_1 = arith.constant 0 : i32
    return %c0_i32, %c0_i32_0 : i32, i32
  }
  func.func @transform_3(%arg0: i32) -> (i32, i32) {
    %c0_i32 = arith.constant 0 : i32
    %c0_i32_0 = arith.constant 0 : i32
    %c0_i32_1 = arith.constant 0 : i32
    return %c0_i32, %c0_i32_0 : i32, i32
  }
  func.func @transform_4(%arg0: i32) -> (i32, i32) {
    %c0_i32 = arith.constant 0 : i32
    %c0_i32_0 = arith.constant 0 : i32
    %c0_i32_1 = arith.constant 0 : i32
    return %c0_i32, %c0_i32_0 : i32, i32
  }
  func.func @transform_5(%arg0: i32) -> (i32, i32) {
    %c0_i32 = arith.constant 0 : i32
    %c0_i32_0 = arith.constant 0 : i32
    %c0_i32_1 = arith.constant 0 : i32
    return %c0_i32, %c0_i32_0 : i32, i32
  }
  func.func @transform_6(%arg0: i32) -> (i32, i32) {
    %c0_i32 = arith.constant 0 : i32
    %c0_i32_0 = arith.constant 0 : i32
    %c0_i32_1 = arith.constant 0 : i32
    return %c0_i32, %c0_i32_0 : i32, i32
  }
  func.func @transform_7(%arg0: i32) -> (i32, i32) {
    %c0_i32 = arith.constant 0 : i32
    %c0_i32_0 = arith.constant 0 : i32
    return %arg0, %c0_i32 : i32, i32
  }
}

</mosaic_0001>

<llo_original>
// kernel: tpu_custom_call.1
$region0: #{tpu_custom_call.1}
  #allocation0 [shape = 'u32[]', space=smem, size = 0x4, offset = 0x4, fixed_abs, tag = 'smem constant byte address 0x4 - core index']
  #allocation1 [shape = 'u32[144,128]{1,0:T(1,128)}', space=vmem, size = 0x12000, scoped, tag = 'internal scratch']
  %s0 = inlined_call_operand.vmem [shape: f32[8,4], index: 0, kind: input, shape index: {}]
  %s1 = inlined_call_operand.vmem [shape: f32[4,128], index: 1, kind: input, shape index: {}]
  %s2 = inlined_call_operand.vmem [shape: f32[1,128], index: 2, kind: input, shape index: {}]
  %s3 = inlined_call_operand.vmem [shape: f32[128,128], index: 3, kind: input, shape index: {}]
  %s4 = inlined_call_operand.vmem [shape: f32[1,128], index: 4, kind: input, shape index: {}]
  %s5 = inlined_call_operand.vmem [shape: f32[128,6], index: 5, kind: input, shape index: {}]
  %s6 = inlined_call_operand.vmem [shape: f32[1,6], index: 6, kind: input, shape index: {}]
  %s7 = inlined_call_operand.hbm [shape: f32[8,6], index: 7, kind: output, shape index: {}]
  %s8 = sld [smem:[#allocation0]]
  $region38: #{tpu_custom_call.1} parent=0
    _
  %s10 = ssub.s32 1, %s8
  %s11 = scalar_select 0, %s10, %s8
  $region1: #{tpu_custom_call.1} parent=0
    #allocation2 [shape = 'u8[4096]{0}', space=vmem, size = 0x1000, scoped, tag = 'output window, operand 0, single buffered']
    #allocation3 [shape = 's32[1]{0}', space=sflag, size = 0x4, scoped, tag = 'scoped memory for tpu_custom_call.1']
    %12 = vsyncpa [#allocation3], 0
    // Predicated region
    $region2: #{tpu_custom_call.1} parent=1 // pred_check
      _
    $region3: #{tpu_custom_call.1} parent=1 // pred_check_branch
      %14 = sbr.rel (0) target = $region5
    $region4: #{tpu_custom_call.1} parent=1 // pred_region
      _
    $region5: #{tpu_custom_call.1} parent=1 // pred_fallthru
      _
    // Predicated region
    $region6: #{tpu_custom_call.1} parent=1 // pred_check
      _
    $region7: #{tpu_custom_call.1} parent=1 // pred_check_branch
      %16 = sbr.rel (0) target = $region9
    $region8: #{tpu_custom_call.1} parent=1 // pred_region
      _
    $region9: #{tpu_custom_call.1} parent=1 // pred_fallthru
      _
    // Predicated region
    $region10: #{tpu_custom_call.1} parent=1 // pred_check
      _
    $region11: #{tpu_custom_call.1} parent=1 // pred_check_branch
      %18 = sbr.rel (0) target = $region13
    $region12: #{tpu_custom_call.1} parent=1 // pred_region
      _
    $region13: #{tpu_custom_call.1} parent=1 // pred_fallthru
      _
    // Predicated region
    $region14: #{tpu_custom_call.1} parent=1 // pred_check
      _
    $region15: #{tpu_custom_call.1} parent=1 // pred_check_branch
      %20 = sbr.rel (0) target = $region17
    $region16: #{tpu_custom_call.1} parent=1 // pred_region
      _
    $region17: #{tpu_custom_call.1} parent=1 // pred_fallthru
      _
    // Predicated region
    $region18: #{tpu_custom_call.1} parent=1 // pred_check
      _
    $region19: #{tpu_custom_call.1} parent=1 // pred_check_branch
      %22 = sbr.rel (0) target = $region21
    $region20: #{tpu_custom_call.1} parent=1 // pred_region
      _
    $region21: #{tpu_custom_call.1} parent=1 // pred_fallthru
      _
    // Predicated region
    $region22: #{tpu_custom_call.1} parent=1 // pred_check
      _
    $region23: #{tpu_custom_call.1} parent=1 // pred_check_branch
      %24 = sbr.rel (0) target = $region25
    $region24: #{tpu_custom_call.1} parent=1 // pred_region
      _
    $region25: #{tpu_custom_call.1} parent=1 // pred_fallthru
      _
    // Predicated region
    $region26: #{tpu_custom_call.1} parent=1 // pred_check
      _
    $region27: #{tpu_custom_call.1} parent=1 // pred_check_branch
      %26 = sbr.rel (0) target = $region29
    $region28: #{tpu_custom_call.1} parent=1 // pred_region
      _
    $region29: #{tpu_custom_call.1} parent=1 // pred_fallthru
      _
    %v27 = vld [vmem:[%s0] sm:$0xff]
    %v28 = vld [vmem:[%s1] sm:$0xf]
    %v29 = vld [vmem:[%s2] sm:$0x1]
    %v31 = vlaneseq
    %v32 = vshrl.u32 %v31, 7
    %v33 = vsub.s32 0, %v32
    %v34 = vrot.slane %v29, %v33
    %vm36 = vcmask 31744
    %v38 = vsel %vm36, %v27, 0
    %vm40 = vcmask 1043456
    %v42 = vsel %vm40, %v28, 0
    %44 = vmatprep.subr.mxu0 0.0
    %45 = vmatpush1.msra.mxu0 %v42
    %46 = vmatprep.subr.mxu0 0.0
    %47 = vmatpush1.msra.mxu0 0.0
    %48 = vmatprep.subr.mxu0 0.0
    %49 = vmatpush1.msra.mxu0 0.0
    %50 = vmatprep.subr.mxu0 0.0
    %51 = vmatpush1.msra.mxu0 0.0
    %52 = vmatprep.subr.mxu0 0.0
    %53 = vmatpush1.msra.mxu0 0.0
    %54 = vmatprep.subr.mxu0 0.0
    %55 = vmatpush1.msra.mxu0 0.0
    %56 = vmatprep.subr.mxu0 0.0
    %57 = vmatpush1.msra.mxu0 0.0
    %58 = vmatprep.subr.mxu0 0.0
    %59 = vmatpush1.msra.mxu0 0.0
    %60 = vmatprep.subr.mxu0 0.0
    %61 = vmatpush1.msra.mxu0 0.0
    %62 = vmatprep.subr.mxu0 0.0
    %63 = vmatpush1.msra.mxu0 0.0
    %64 = vmatprep.subr.mxu0 0.0
    %65 = vmatpush1.msra.mxu0 0.0
    %66 = vmatprep.subr.mxu0 0.0
    %67 = vmatpush1.msra.mxu0 0.0
    %68 = vmatprep.subr.mxu0 0.0
    %69 = vmatpush1.msra.mxu0 0.0
    %70 = vmatprep.subr.mxu0 0.0
    %71 = vmatpush1.msra.mxu0 0.0
    %72 = vmatprep.subr.mxu0 0.0
    %73 = vmatpush1.msra.mxu0 0.0
    %74 = vmatprep.subr.mxu0 0.0
    %75 = vmatpush1.msra.mxu0 0.0
    %76 = vmatprep.subr.mxu0 0.0
    %77 = vmatpush1.msra.mxu0 0.0
    %78 = vmatprep.subr.mxu0 0.0
    %79 = vmatpush1.msra.mxu0 0.0
    %80 = vmatprep.subr.mxu0 0.0
    %81 = vmatpush1.msra.mxu0 0.0
    %82 = vmatprep.subr.mxu0 0.0
    %83 = vmatpush1.msra.mxu0 0.0
    %84 = vmatprep.subr.mxu0 0.0
    %85 = vmatpush1.msra.mxu0 0.0
    %86 = vmatprep.subr.mxu0 0.0
    %87 = vmatpush1.msra.mxu0 0.0
    %88 = vmatprep.subr.mxu0 0.0
    %89 = vmatpush1.msra.mxu0 0.0
    %90 = vmatprep.subr.mxu0 0.0
    %91 = vmatpush1.msra.mxu0 0.0
    %92 = vmatprep.subr.mxu0 0.0
    %93 = vmatpush1.msra.mxu0 0.0
    %94 = vmatprep.subr.mxu0 0.0
    %95 = vmatpush1.msra.mxu0 0.0
    %96 = vmatprep.subr.mxu0 0.0
    %97 = vmatpush1.msra.mxu0 0.0
    %98 = vmatprep.subr.mxu0 0.0
    %99 = vmatpush1.msra.mxu0 0.0
    %100 = vmatprep.subr.mxu0 0.0
    %101 = vmatpush1.msra.mxu0 0.0
    %102 = vmatprep.subr.mxu0 0.0
    %103 = vmatpush1.msra.mxu0 0.0
    %104 = vmatprep.subr.mxu0 0.0
    %105 = vmatpush1.msra.mxu0 0.0
    %106 = vmatprep.subr.mxu0 0.0
    %107 = vmatpush1.msra.mxu0 0.0
    %108 = vmatprep.mubr.f32.mxu0 0.0
    %109 = vmatmul.mubr.f32.gmra.mrb[0].mxu0 %v38
    %v110 = vpop.f32.mrb[0].mxu0
    %v111 = vadd.f32 %v34, %v110
    %v112 = vpop.f32.mrb[0].mxu0
    %113 = vdwg.mxu0
    %v114 = vmul.f32 %v111, %v111
    %v115 = vmul.f32 %v111, %v114
    %v116 = vmul.f32 %v115, 0.044715
    %v117 = vadd.f32 %v111, %v116
    %v118 = vmul.f32 %v117, 0.7978846
    %v119 = vtanh.pop %v118
    %v120 = vadd.f32 %v119, 1.0
    %v121 = vmul.f32 %v120, 0.5
    %v122 = vmul.f32 %v111, %v121
    %v123 = vld [vmem:[%s3] sm:$0xff]
    %v124 = vld [vmem:[%s3 + $0x8] sm:$0xff]
    %v125 = vld [vmem:[%s3 + $0x10] sm:$0xff]
    %v126 = vld [vmem:[%s3 + $0x18] sm:$0xff]
    %v127 = vld [vmem:[%s3 + $0x20] sm:$0xff]
    %v128 = vld [vmem:[%s3 + $0x28] sm:$0xff]
    %v129 = vld [vmem:[%s3 + $0x30] sm:$0xff]
    %v130 = vld [vmem:[%s3 + $0x38] sm:$0xff]
    %v131 = vld [vmem:[%s3 + $0x40] sm:$0xff]
    %v132 = vld [vmem:[%s3 + $0x48] sm:$0xff]
    %v133 = vld [vmem:[%s3 + $0x50] sm:$0xff]
    %v134 = vld [vmem:[%s3 + $0x58] sm:$0xff]
    %v135 = vld [vmem:[%s3 + $0x60] sm:$0xff]
    %v136 = vld [vmem:[%s3 + $0x68] sm:$0xff]
    %v137 = vld [vmem:[%s3 + $0x70] sm:$0xff]
    %v138 = vld [vmem:[%s3 + $0x78] sm:$0xff]
    %v139 = vld [vmem:[%s4] sm:$0x1]
    %v141 = vlaneseq
    %v142 = vshrl.u32 %v141, 7
    %v143 = vsub.s32 0, %v142
    %v144 = vrot.slane %v139, %v143
    %146 = vmatprep.subr.mxu0 0.0
    %147 = vmatpush1.msra.mxu0 %v123
    %148 = vmatprep.subr.mxu0 0.0
    %149 = vmatpush1.msra.mxu0 %v124
    %150 = vmatprep.subr.mxu0 0.0
    %151 = vmatpush1.msra.mxu0 %v125
    %152 = vmatprep.subr.mxu0 0.0
    %153 = vmatpush1.msra.mxu0 %v126
    %154 = vmatprep.subr.mxu0 0.0
    %155 = vmatpush1.msra.mxu0 %v127
    %156 = vmatprep.subr.mxu0 0.0
    %157 = vmatpush1.msra.mxu0 %v128
    %158 = vmatprep.subr.mxu0 0.0
    %159 = vmatpush1.msra.mxu0 %v129
    %160 = vmatprep.subr.mxu0 0.0
    %161 = vmatpush1.msra.mxu0 %v130
    %162 = vmatprep.subr.mxu0 0.0
    %163 = vmatpush1.msra.mxu0 %v131
    %164 = vmatprep.subr.mxu0 0.0
    %165 = vmatpush1.msra.mxu0 %v132
    %166 = vmatprep.subr.mxu0 0.0
    %167 = vmatpush1.msra.mxu0 %v133
    %168 = vmatprep.subr.mxu0 0.0
    %169 = vmatpush1.msra.mxu0 %v134
    %170 = vmatprep.subr.mxu0 0.0
    %171 = vmatpush1.msra.mxu0 %v135
    %172 = vmatprep.subr.mxu0 0.0
    %173 = vmatpush1.msra.mxu0 %v136
    %174 = vmatprep.subr.mxu0 0.0
    %175 = vmatpush1.msra.mxu0 %v137
    %176 = vmatprep.subr.mxu0 0.0
    %177 = vmatpush1.msra.mxu0 %v138
    %178 = vmatprep.subr.mxu0 0.0
    %179 = vmatpush1.msra.mxu0 0.0
    %180 = vmatprep.subr.mxu0 0.0
    %181 = vmatpush1.msra.mxu0 0.0
    %182 = vmatprep.subr.mxu0 0.0
    %183 = vmatpush1.msra.mxu0 0.0
    %184 = vmatprep.subr.mxu0 0.0
    %185 = vmatpush1.msra.mxu0 0.0
    %186 = vmatprep.subr.mxu0 0.0
    %187 = vmatpush1.msra.mxu0 0.0
    %188 = vmatprep.subr.mxu0 0.0
    %189 = vmatpush1.msra.mxu0 0.0
    %190 = vmatprep.subr.mxu0 0.0
    %191 = vmatpush1.msra.mxu0 0.0
    %192 = vmatprep.subr.mxu0 0.0
    %193 = vmatpush1.msra.mxu0 0.0
    %194 = vmatprep.subr.mxu0 0.0
    %195 = vmatpush1.msra.mxu0 0.0
    %196 = vmatprep.subr.mxu0 0.0
    %197 = vmatpush1.msra.mxu0 0.0
    %198 = vmatprep.subr.mxu0 0.0
    %199 = vmatpush1.msra.mxu0 0.0
    %200 = vmatprep.subr.mxu0 0.0
    %201 = vmatpush1.msra.mxu0 0.0
    %202 = vmatprep.subr.mxu0 0.0
    %203 = vmatpush1.msra.mxu0 0.0
    %204 = vmatprep.subr.mxu0 0.0
    %205 = vmatpush1.msra.mxu0 0.0
    %206 = vmatprep.subr.mxu0 0.0
    %207 = vmatpush1.msra.mxu0 0.0
    %208 = vmatprep.subr.mxu0 0.0
    %209 = vmatpush1.msra.mxu0 0.0
    %210 = vmatprep.mubr.f32.mxu0 0.0
    %211 = vmatmul.mubr.f32.gmra.mrb[0].mxu0 %v122
    %v212 = vpop.f32.mrb[0].mxu0
    %v213 = vadd.f32 %v144, %v212
    %v214 = vpop.f32.mrb[0].mxu0
    %215 = vdwg.mxu0
    %v216 = vmul.f32 %v213, %v213
    %v217 = vmul.f32 %v213, %v216
    %v218 = vmul.f32 %v217, 0.044715
    %v219 = vadd.f32 %v213, %v218
    %v220 = vmul.f32 %v219, 0.7978846
    %v221 = vtanh.pop %v220
    %v222 = vadd.f32 %v221, 1.0
    %v223 = vmul.f32 %v222, 0.5
    %v224 = vmul.f32 %v213, %v223
    %v225 = vld [vmem:[%s5] sm:$0xff]
    %v226 = vld [vmem:[%s5 + $0x8] sm:$0xff]
    %v227 = vld [vmem:[%s5 + $0x10] sm:$0xff]
    %v228 = vld [vmem:[%s5 + $0x18] sm:$0xff]
    %v229 = vld [vmem:[%s5 + $0x20] sm:$0xff]
    %v230 = vld [vmem:[%s5 + $0x28] sm:$0xff]
    %v231 = vld [vmem:[%s5 + $0x30] sm:$0xff]
    %v232 = vld [vmem:[%s5 + $0x38] sm:$0xff]
    %v233 = vld [vmem:[%s5 + $0x40] sm:$0xff]
    %v234 = vld [vmem:[%s5 + $0x48] sm:$0xff]
    %v235 = vld [vmem:[%s5 + $0x50] sm:$0xff]
    %v236 = vld [vmem:[%s5 + $0x58] sm:$0xff]
    %v237 = vld [vmem:[%s5 + $0x60] sm:$0xff]
    %v238 = vld [vmem:[%s5 + $0x68] sm:$0xff]
    %v239 = vld [vmem:[%s5 + $0x70] sm:$0xff]
    %v240 = vld [vmem:[%s5 + $0x78] sm:$0xff]
    %v241 = vld [vmem:[%s6] sm:$0x1]
    %v243 = vlaneseq
    %v244 = vshrl.u32 %v243, 7
    %v245 = vsub.s32 0, %v244
    %v246 = vrot.slane %v241, %v245
    %248 = vmatprep.subr.mxu0 0.0
    %249 = vmatpush1.msra.mxu0 %v225
    %250 = vmatprep.subr.mxu0 0.0
    %251 = vmatpush1.msra.mxu0 %v226
    %252 = vmatprep.subr.mxu0 0.0
    %253 = vmatpush1.msra.mxu0 %v227
    %254 = vmatprep.subr.mxu0 0.0
    %255 = vmatpush1.msra.mxu0 %v228
    %256 = vmatprep.subr.mxu0 0.0
    %257 = vmatpush1.msra.mxu0 %v229
    %258 = vmatprep.subr.mxu0 0.0
    %259 = vmatpush1.msra.mxu0 %v230
    %260 = vmatprep.subr.mxu0 0.0
    %261 = vmatpush1.msra.mxu0 %v231
    %262 = vmatprep.subr.mxu0 0.0
    %263 = vmatpush1.msra.mxu0 %v232
    %264 = vmatprep.subr.mxu0 0.0
    %265 = vmatpush1.msra.mxu0 %v233
    %266 = vmatprep.subr.mxu0 0.0
    %267 = vmatpush1.msra.mxu0 %v234
    %268 = vmatprep.subr.mxu0 0.0
    %269 = vmatpush1.msra.mxu0 %v235
    %270 = vmatprep.subr.mxu0 0.0
    %271 = vmatpush1.msra.mxu0 %v236
    %272 = vmatprep.subr.mxu0 0.0
    %273 = vmatpush1.msra.mxu0 %v237
    %274 = vmatprep.subr.mxu0 0.0
    %275 = vmatpush1.msra.mxu0 %v238
    %276 = vmatprep.subr.mxu0 0.0
    %277 = vmatpush1.msra.mxu0 %v239
    %278 = vmatprep.subr.mxu0 0.0
    %279 = vmatpush1.msra.mxu0 %v240
    %280 = vmatprep.subr.mxu0 0.0
    %281 = vmatpush1.msra.mxu0 0.0
    %282 = vmatprep.subr.mxu0 0.0
    %283 = vmatpush1.msra.mxu0 0.0
    %284 = vmatprep.subr.mxu0 0.0
    %285 = vmatpush1.msra.mxu0 0.0
    %286 = vmatprep.subr.mxu0 0.0
    %287 = vmatpush1.msra.mxu0 0.0
    %288 = vmatprep.subr.mxu0 0.0
    %289 = vmatpush1.msra.mxu0 0.0
    %290 = vmatprep.subr.mxu0 0.0
    %291 = vmatpush1.msra.mxu0 0.0
    %292 = vmatprep.subr.mxu0 0.0
    %293 = vmatpush1.msra.mxu0 0.0
    %294 = vmatprep.subr.mxu0 0.0
    %295 = vmatpush1.msra.mxu0 0.0
    %296 = vmatprep.subr.mxu0 0.0
    %297 = vmatpush1.msra.mxu0 0.0
    %298 = vmatprep.subr.mxu0 0.0
    %299 = vmatpush1.msra.mxu0 0.0
    %300 = vmatprep.subr.mxu0 0.0
    %301 = vmatpush1.msra.mxu0 0.0
    %302 = vmatprep.subr.mxu0 0.0
    %303 = vmatpush1.msra.mxu0 0.0
    %304 = vmatprep.subr.mxu0 0.0
    %305 = vmatpush1.msra.mxu0 0.0
    %306 = vmatprep.subr.mxu0 0.0
    %307 = vmatpush1.msra.mxu0 0.0
    %308 = vmatprep.subr.mxu0 0.0
    %309 = vmatpush1.msra.mxu0 0.0
    %310 = vmatprep.subr.mxu0 0.0
    %311 = vmatpush1.msra.mxu0 0.0
    %312 = vmatprep.mubr.f32.mxu0 0.0
    %313 = vmatmul.mubr.f32.gmra.mrb[0].mxu0 %v224
    %v314 = vpop.f32.mrb[0].mxu0
    %v315 = vadd.f32 %v246, %v314
    %v316 = vpop.f32.mrb[0].mxu0
    %317 = vdwg.mxu0
    %vm318 = vcmask 48128
    %v319 = vsel %vm318, %v315, -inf
    %320 = vmax.xlane.f32.xlu0 %v319
    %v321 = vpop.xlane.xlu0 %320
    %v322 = vsub.f32 %v315, %v321
    %v323 = vmul.f32 %v322, 1.442695
    %v324 = vpow.pop %v323
    %v325 = vsel %vm318, %v324, 0.0
    %326 = vadd.xlane.f32.xlu0 %v325
    %v327 = vpop.xlane.xlu0 %326
    %v328 = vrcp.pop %v327
    %v329 = vmul.f32 %v324, %v328
    %330 = vst.msk [vmem:[#allocation2] sm:$0xff] %vm318, %v329
    // Predicated region
    $region30: #{tpu_custom_call.1} parent=1 // pred_check
      _
    $region31: #{tpu_custom_call.1} parent=1 // pred_check_branch
      %332 = sbr.rel (0) target = $region33
    $region32: #{tpu_custom_call.1} parent=1 // pred_region
      %s334 = ssub.s32 128, 128
      %335 = vsyncadd [#allocation3], %s334
      %s337 = sshll.u32 [#allocation2], 4
      %s338 = int_to_ptr.vmem [resolvable:$true] %s337
      %340 = dma.vmem_to_hbm [thread:$0]  %s338, 128, %s7, [#allocation3]
    $region33: #{tpu_custom_call.1} parent=1 // pred_fallthru
      _
    // Predicated region
    $region34: #{tpu_custom_call.1} parent=1 // pred_check
      _
    $region35: #{tpu_custom_call.1} parent=1 // pred_check_branch
      %342 = sbr.rel (0) target = $region37
    $region36: #{tpu_custom_call.1} parent=1 // pred_region
      %343 = dma.done [#allocation3], 128
    $region37: #{tpu_custom_call.1} parent=1 // pred_fallthru
      _
    %344 = vsyncpa [#allocation3], 1

</llo_original>
